<compile_context>
chip_gen: v7x
topology: tpu7x:2x2x1
jax: 0.10.0
libtpu: 0.0.40
codegen_flags: <defaults>
</compile_context>

<pallas_src>
import functools

import jax
import jax.numpy as jnp
from jax import lax
from jax.experimental import pallas as pl
from jax.experimental.pallas import tpu as pltpu

# Large *finite* sentinel for the masked max/min (avoids inf-inf NaN edges).
_BIG = 1e30


def _triplet_hard_kernel(xr_ref, xc_ref, sqr_ref, sqc_ref, tr_ref, tc_ref,
                         hinge_ref, ap_acc, an_acc,
                         *, margin, tn, n_valid, n_pad):
    j = pl.program_id(1)

    @pl.when(j == 0)
    def _init():
        ap_acc[...] = jnp.full(ap_acc.shape, -_BIG, dtype=ap_acc.dtype)
        an_acc[...] = jnp.full(an_acc.shape, _BIG, dtype=an_acc.dtype)

    # Gram tile on the MXU in the operands' native dtype (NT form: contract
    # the last axes, no explicit transpose), f32 accumulation.
    gram = lax.dot_general(
        xr_ref[...], xc_ref[...],
        dimension_numbers=(((1,), (1,)), ((), ())),
        preferred_element_type=jnp.float32)                  # (TM, TN) f32

    # Squared distances from the precomputed norms (no sqrt here).
    dist2 = sqr_ref[...] + sqc_ref[...] - 2.0 * gram         # (TM, TN) f32

    # Same-class mask via broadcast compare of the two label blocks.
    same = tr_ref[...] == tc_ref[...]                         # (TM, TN) bool

    if n_valid == n_pad:
        ap_cand = jnp.where(same, dist2, -_BIG)
        an_cand = jnp.where(same, _BIG, dist2)
    else:
        # Padded columns must never be selected (neither as positive nor as
        # negative).  Column index along the lane axis.
        col_idx = j * tn + lax.broadcasted_iota(jnp.int32, (1, tn), 1)
        valid = col_idx < n_valid                              # (1, TN) bool
        ap_cand = jnp.where(same & valid, dist2, -_BIG)
        an_cand = jnp.where(same | (~valid), _BIG, dist2)

    ap_acc[...] = jnp.maximum(ap_acc[...], jnp.max(ap_cand, axis=1, keepdims=True))
    an_acc[...] = jnp.minimum(an_acc[...], jnp.min(an_cand, axis=1, keepdims=True))

    @pl.when(j == pl.num_programs(1) - 1)
    def _finalize():
        # clamp(1e-12) + sqrt are monotonic, so applying them to the (TM, 1)
        # accumulators is equivalent to applying them per-element first.
        d_ap = jnp.sqrt(jnp.maximum(ap_acc[...], 1e-12))
        d_an = jnp.sqrt(jnp.maximum(an_acc[...], 1e-12))
        # MarginRankingLoss with y = 1: max(0, dist_ap - dist_an + margin)
        hinge_ref[...] = jnp.maximum(d_ap - d_an + margin, 0.0)


def _round_up(x, m):
    return ((x + m - 1) // m) * m


def _chip_info():
    """(is_v5e, is_v7x, vmem_capacity_bytes), robust to unknown platforms."""
    kind = ""
    try:
        kind = jax.devices()[0].device_kind.lower()
    except Exception:
        pass
    is_v5e = ("v5 lite" in kind) or ("v5e" in kind) or ("v5lite" in kind)
    is_v7 = "v7" in kind
    vmem_cap = None
    try:
        vmem_cap = int(pltpu.get_tpu_info().vmem_capacity_bytes)
    except Exception:
        vmem_cap = None
    if vmem_cap is None or vmem_cap <= 0:
        vmem_cap = (64 << 20) if is_v7 else (128 << 20)
    return is_v5e, is_v7, vmem_cap


def _footprint(tm, tn, d, itemsize):
    """Rough VMEM working set: double-buffered feature blocks, (TM,TN) f32
    temporaries (gram/dist2/selects), norms, labels, accumulators."""
    feat = 2 * 2 * (tm + tn) * d * itemsize            # double-buffered inputs
    tiles = 6 * tm * tn * 4                            # (TM, TN) f32 temporaries
    misc = 4 * (tm + tn) * 4 + 4 * tm * 4 + (1 << 16)  # norms/labels/acc/out
    return feat + tiles + misc


def _plan(n, d, itemsize):
    """Pick (tm, tn, n_pad, vmem_limit_bytes) for the current TPU generation."""
    is_v5e, is_v7, vmem_cap = _chip_info()
    cap = max(vmem_cap - (16 << 20), 16 << 20)   # headroom for compiler scratch

    if n <= 128:
        # Single column tile; pad rows to a sublane multiple.
        n_pad = _round_up(n, 8)
        tm = tn = n_pad
        if is_v7 and n_pad >= 16 and n_pad % 16 == 0:
            tm = n_pad // 2            # >=2 row blocks -> both TensorCores busy
    else:
        tn = 128 if is_v5e else 256    # v5e MXU is 4x128x128; v6e/v7x are 256-wide
        tm = 256
        if (not is_v5e) and (not is_v7) and d * itemsize <= 8 * 1024:
            tm = 512                   # v6e: big VMEM -> halve column re-reads
        n_pad = _round_up(n, max(tm, tn))
        if is_v7 and (n_pad // tm) < 2 and tm % 16 == 0:
            tm //= 2                   # keep the 2-TC megacore fed
        while _footprint(tm, tn, d, itemsize) > cap and tm > 128 and tm % 16 == 0:
            tm //= 2                   # shrink row tile before overflowing VMEM

    vmem_bytes = max(4 << 20, min(int(1.25 * _footprint(tm, tn, d, itemsize)), cap))
    return tm, tn, n_pad, vmem_bytes


def triplet_hard_loss(inputs, targets, margin=0.3):
    """Pallas equivalent of TripletHardLoss.forward (mutual_flag=False)."""
    n, d = inputs.shape
    itemsize = jnp.dtype(inputs.dtype).itemsize
    tm, tn, n_pad, vmem_bytes = _plan(n, d, itemsize)

    x = inputs
    t = targets.astype(jnp.int32).reshape(n)
    if n_pad != n:
        x = jnp.pad(inputs, ((0, n_pad - n), (0, 0)))
        t = jnp.pad(t, (0, n_pad - n), constant_values=-1)

    # Per-sample squared norms computed ONCE (f32), streamed as row/col blocks.
    xf = x.astype(jnp.float32)
    sq = jnp.sum(xf * xf, axis=1)
    sq_row = sq.reshape(n_pad, 1)
    sq_col = sq.reshape(1, n_pad)
    t_row = t.reshape(n_pad, 1)
    t_col = t.reshape(1, n_pad)

    kernel = functools.partial(
        _triplet_hard_kernel,
        margin=float(margin), tn=tn, n_valid=n, n_pad=n_pad)

    hinge = pl.pallas_call(
        kernel,
        out_shape=jax.ShapeDtypeStruct((n_pad, 1), jnp.float32),
        grid_spec=pltpu.PrefetchScalarGridSpec(
            num_scalar_prefetch=0,
            grid=(n_pad // tm, n_pad // tn),
            in_specs=[
                pl.BlockSpec((tm, d), lambda i, j: (i, 0)),   # row features
                pl.BlockSpec((tn, d), lambda i, j: (j, 0)),   # col features
                pl.BlockSpec((tm, 1), lambda i, j: (i, 0)),   # row sq-norms
                pl.BlockSpec((1, tn), lambda i, j: (0, j)),   # col sq-norms
                pl.BlockSpec((tm, 1), lambda i, j: (i, 0)),   # row labels
                pl.BlockSpec((1, tn), lambda i, j: (0, j)),   # col labels
            ],
            out_specs=pl.BlockSpec((tm, 1), lambda i, j: (i, 0)),
            scratch_shapes=[
                pltpu.VMEM((tm, 1), jnp.float32),   # running hardest-positive (d^2)
                pltpu.VMEM((tm, 1), jnp.float32),   # running hardest-negative (d^2)
            ],
        ),
        compiler_params=pltpu.CompilerParams(
            dimension_semantics=("parallel", "arbitrary"),
            vmem_limit_bytes=vmem_bytes,
        ),
    )(x, x, sq_row, sq_col, t_row, t_col)

    # Mean over the real (non-padded) samples; tiny reduce left to XLA.
    return jnp.sum(hinge[:n, 0]) / n


def _reference(inputs, targets, margin=0.3):
    # Pure-JAX reference mirroring the PyTorch module for a sanity check.
    x = inputs.astype(jnp.float32)
    sq = jnp.sum(x * x, axis=1, keepdims=True)
    dist = jnp.sqrt(jnp.maximum(sq + sq.T - 2.0 * (x @ x.T), 1e-12))
    mask = targets[:, None] == targets[None, :]
    dist_ap = jnp.max(jnp.where(mask, dist, -jnp.inf), axis=1)
    dist_an = jnp.min(jnp.where(mask, jnp.inf, dist), axis=1)
    return jnp.mean(jnp.maximum(dist_ap - dist_an + margin, 0.0))


if __name__ == "__main__":
    key = jax.random.PRNGKey(0)

    # Small case consistent with the module (batch=8, feat_dim=32): 1x1 grid.
    n, feat_dim = 8, 32
    inputs = jax.random.normal(key, (n, feat_dim), dtype=jnp.float32)
    targets = jnp.array([0, 0, 1, 1, 2, 2, 3, 3], dtype=jnp.int32)  # 4 classes x 2
    loss = jax.block_until_ready(triplet_hard_loss(inputs, targets, margin=0.3))
    ref = _reference(inputs, targets, margin=0.3)
    assert jnp.allclose(loss, ref, atol=1e-4, rtol=1e-4), (loss, ref)

    # Larger case exercising the (row, col) tiling and the software pipeline.
    k1, k2 = jax.random.split(key)
    n2, d2 = 512, 128
    inputs2 = jax.random.normal(k1, (n2, d2), dtype=jnp.float32)
    targets2 = jnp.arange(n2, dtype=jnp.int32) % 16   # 16 classes x 32 samples
    loss2 = jax.block_until_ready(triplet_hard_loss(inputs2, targets2, margin=0.3))
    ref2 = _reference(inputs2, targets2, margin=0.3)
    assert jnp.allclose(loss2, ref2, atol=5e-3, rtol=5e-3), (loss2, ref2)

    # Non-divisible batch: exercises padding + valid-column masking.
    n3, d3 = 300, 96
    inputs3 = jax.random.normal(k2, (n3, d3), dtype=jnp.float32)
    targets3 = jnp.arange(n3, dtype=jnp.int32) % 10   # 10 classes
    loss3 = jax.block_until_ready(triplet_hard_loss(inputs3, targets3, margin=0.3))
    ref3 = _reference(inputs3, targets3, margin=0.3)
    assert jnp.allclose(loss3, ref3, atol=5e-3, rtol=5e-3), (loss3, ref3)

    print("KERNEL_OK")
</pallas_src>

<mosaic_0001>
module attributes {stable_mosaic.version = 11 : i64} {
  func.func @_triplet_hard_kernel(%arg0: i32, %arg1: i32, %arg2: memref<8x32xf32, #tpu.memory_space<vmem>>, %arg3: memref<8x32xf32, #tpu.memory_space<vmem>>, %arg4: memref<8x1xf32, #tpu.memory_space<vmem>>, %arg5: memref<1x8xf32, #tpu.memory_space<vmem>>, %arg6: memref<8x1xi32, #tpu.memory_space<vmem>>, %arg7: memref<1x8xi32, #tpu.memory_space<vmem>>, %arg8: memref<8x1xf32, #tpu.memory_space<vmem>>, %arg9: memref<8x1xf32, #tpu.memory_space<vmem>>, %arg10: memref<8x1xf32, #tpu.memory_space<vmem>>) attributes {dimension_semantics = [#tpu.dimension_semantics<parallel>, #tpu.dimension_semantics<arbitrary>], iteration_bounds = array<i64: 1, 1>, scalar_prefetch = 0 : i64, scratch_operands = 2 : i64, tpu.core_type = #tpu.core_type<tc>, window_params = [{transform_indices = @transform_0, window_bounds = array<i64: 8, 32>}, {transform_indices = @transform_1, window_bounds = array<i64: 8, 32>}, {transform_indices = @transform_2, window_bounds = array<i64: 8, 1>}, {transform_indices = @transform_3, window_bounds = array<i64: 1, 8>}, {transform_indices = @transform_4, window_bounds = array<i64: 8, 1>}, {transform_indices = @transform_5, window_bounds = array<i64: 1, 8>}, {transform_indices = @transform_6, window_bounds = array<i64: 8, 1>}]} {
    %c0_i32 = arith.constant 0 : i32
    %0 = arith.cmpi eq, %arg1, %c0_i32 : i32
    %1 = arith.extui %0 : i1 to i32
    %c0_i32_0 = arith.constant 0 : i32
    %2 = arith.cmpi ne, %1, %c0_i32_0 : i32
    scf.if %2 {
      %cst_27 = arith.constant -1.000000e+30 : f32
      %36 = vector.broadcast %cst_27 : f32 to vector<8x1xf32>
      %c0_28 = arith.constant 0 : index
      %c0_29 = arith.constant 0 : index
      %37 = vector.load %arg9[%c0_28, %c0_29] : memref<8x1xf32, #tpu.memory_space<vmem>>, vector<8x1xf32>
      tpu.vector_store %arg9[%c0_28, %c0_29], %36 {strides = array<i32>} : memref<8x1xf32, #tpu.memory_space<vmem>>, vector<8x1xf32>,
      %cst_30 = arith.constant 1.000000e+30 : f32
      %38 = vector.broadcast %cst_30 : f32 to vector<8x1xf32>
      %c0_31 = arith.constant 0 : index
      %c0_32 = arith.constant 0 : index
      %39 = vector.load %arg10[%c0_31, %c0_32] : memref<8x1xf32, #tpu.memory_space<vmem>>, vector<8x1xf32>
      tpu.vector_store %arg10[%c0_31, %c0_32], %38 {strides = array<i32>} : memref<8x1xf32, #tpu.memory_space<vmem>>, vector<8x1xf32>,
    } else {
    }
    %c0 = arith.constant 0 : index
    %c0_1 = arith.constant 0 : index
    %3 = vector.load %arg2[%c0, %c0_1] : memref<8x32xf32, #tpu.memory_space<vmem>>, vector<8x32xf32>
    %c0_2 = arith.constant 0 : index
    %c0_3 = arith.constant 0 : index
    %4 = vector.load %arg3[%c0_2, %c0_3] : memref<8x32xf32, #tpu.memory_space<vmem>>, vector<8x32xf32>
    %cst = arith.constant dense<0.000000e+00> : vector<8x8xf32>
    %5 = tpu.matmul %3, %4, %cst {dimension_numbers = #tpu.dot_dimension_numbers<[1], [1], [0], [0], [0, 0, 1, 0], [], []>} : vector<8x32xf32>, vector<8x32xf32>, vector<8x8xf32> -> vector<8x8xf32>
    %c0_4 = arith.constant 0 : index
    %c0_5 = arith.constant 0 : index
    %6 = vector.load %arg4[%c0_4, %c0_5] : memref<8x1xf32, #tpu.memory_space<vmem>>, vector<8x1xf32>
    %c0_6 = arith.constant 0 : index
    %c0_7 = arith.constant 0 : index
    %7 = vector.load %arg5[%c0_6, %c0_7] : memref<1x8xf32, #tpu.memory_space<vmem>>, vector<1x8xf32>
    %8 = vector.broadcast %6 : vector<8x1xf32> to vector<8x8xf32>
    %9 = vector.broadcast %7 : vector<1x8xf32> to vector<8x8xf32>
    %10 = arith.addf %8, %9 : vector<8x8xf32>
    %cst_8 = arith.constant 2.000000e+00 : f32
    %11 = vector.broadcast %cst_8 : f32 to vector<8x8xf32>
    %12 = arith.mulf %11, %5 : vector<8x8xf32>
    %13 = arith.subf %10, %12 : vector<8x8xf32>
    %c0_9 = arith.constant 0 : index
    %c0_10 = arith.constant 0 : index
    %14 = vector.load %arg6[%c0_9, %c0_10] : memref<8x1xi32, #tpu.memory_space<vmem>>, vector<8x1xi32>
    %c0_11 = arith.constant 0 : index
    %c0_12 = arith.constant 0 : index
    %15 = vector.load %arg7[%c0_11, %c0_12] : memref<1x8xi32, #tpu.memory_space<vmem>>, vector<1x8xi32>
    %16 = vector.broadcast %14 : vector<8x1xi32> to vector<8x8xi32>
    %17 = vector.broadcast %15 : vector<1x8xi32> to vector<8x8xi32>
    %18 = arith.cmpi eq, %16, %17 : vector<8x8xi32>
    %cst_13 = arith.constant -1.000000e+30 : f32
    %19 = vector.broadcast %cst_13 : f32 to vector<8x8xf32>
    %20 = arith.select %18, %13, %19 : vector<8x8xi1>, vector<8x8xf32>
    %cst_14 = arith.constant 1.000000e+30 : f32
    %21 = vector.broadcast %cst_14 : f32 to vector<8x8xf32>
    %22 = arith.select %18, %21, %13 : vector<8x8xi1>, vector<8x8xf32>
    %c0_15 = arith.constant 0 : index
    %c0_16 = arith.constant 0 : index
    %23 = vector.load %arg9[%c0_15, %c0_16] : memref<8x1xf32, #tpu.memory_space<vmem>>, vector<8x1xf32>
    %cst_17 = arith.constant dense<0xFF800000> : vector<8xf32>
    %24 = vector.multi_reduction <maximumf>, %20, %cst_17 [1] : vector<8x8xf32> to vector<8xf32>
    %25 = vector.shape_cast %24 : vector<8xf32> to vector<8x1xf32>
    %26 = arith.maximumf %23, %25 : vector<8x1xf32>
    %c0_18 = arith.constant 0 : index
    %c0_19 = arith.constant 0 : index
    %27 = vector.load %arg9[%c0_18, %c0_19] : memref<8x1xf32, #tpu.memory_space<vmem>>, vector<8x1xf32>
    tpu.vector_store %arg9[%c0_18, %c0_19], %26 {strides = array<i32>} : memref<8x1xf32, #tpu.memory_space<vmem>>, vector<8x1xf32>,
    %c0_20 = arith.constant 0 : index
    %c0_21 = arith.constant 0 : index
    %28 = vector.load %arg10[%c0_20, %c0_21] : memref<8x1xf32, #tpu.memory_space<vmem>>, vector<8x1xf32>
    %cst_22 = arith.constant dense<0x7F800000> : vector<8xf32>
    %29 = vector.multi_reduction <minimumf>, %22, %cst_22 [1] : vector<8x8xf32> to vector<8xf32>
    %30 = vector.shape_cast %29 : vector<8xf32> to vector<8x1xf32>
    %31 = arith.minimumf %28, %30 : vector<8x1xf32>
    %c0_23 = arith.constant 0 : index
    %c0_24 = arith.constant 0 : index
    %32 = vector.load %arg10[%c0_23, %c0_24] : memref<8x1xf32, #tpu.memory_space<vmem>>, vector<8x1xf32>
    tpu.vector_store %arg10[%c0_23, %c0_24], %31 {strides = array<i32>} : memref<8x1xf32, #tpu.memory_space<vmem>>, vector<8x1xf32>,
    %c0_i32_25 = arith.constant 0 : i32
    %33 = arith.cmpi eq, %arg1, %c0_i32_25 : i32
    %34 = arith.extui %33 : i1 to i32
    %c0_i32_26 = arith.constant 0 : i32
    %35 = arith.cmpi ne, %34, %c0_i32_26 : i32
    scf.if %35 {
      %c0_27 = arith.constant 0 : index
      %c0_28 = arith.constant 0 : index
      %36 = vector.load %arg9[%c0_27, %c0_28] : memref<8x1xf32, #tpu.memory_space<vmem>>, vector<8x1xf32>
      %cst_29 = arith.constant 9.99999996E-13 : f32
      %37 = vector.broadcast %cst_29 : f32 to vector<8x1xf32>
      %38 = arith.maximumf %36, %37 : vector<8x1xf32>
      %39 = math.sqrt %38 : vector<8x1xf32>
      %c0_30 = arith.constant 0 : index
      %c0_31 = arith.constant 0 : index
      %40 = vector.load %arg10[%c0_30, %c0_31] : memref<8x1xf32, #tpu.memory_space<vmem>>, vector<8x1xf32>
      %cst_32 = arith.constant 9.99999996E-13 : f32
      %41 = vector.broadcast %cst_32 : f32 to vector<8x1xf32>
      %42 = arith.maximumf %40, %41 : vector<8x1xf32>
      %43 = math.sqrt %42 : vector<8x1xf32>
      %44 = arith.subf %39, %43 : vector<8x1xf32>
      %cst_33 = arith.constant 3.000000e-01 : f32
      %45 = vector.broadcast %cst_33 : f32 to vector<8x1xf32>
      %46 = arith.addf %44, %45 : vector<8x1xf32>
      %cst_34 = arith.constant 0.000000e+00 : f32
      %47 = vector.broadcast %cst_34 : f32 to vector<8x1xf32>
      %48 = arith.maximumf %46, %47 : vector<8x1xf32>
      %c0_35 = arith.constant 0 : index
      %c0_36 = arith.constant 0 : index
      %49 = vector.load %arg8[%c0_35, %c0_36] : memref<8x1xf32, #tpu.memory_space<vmem>>, vector<8x1xf32>
      tpu.vector_store %arg8[%c0_35, %c0_36], %48 {strides = array<i32>} : memref<8x1xf32, #tpu.memory_space<vmem>>, vector<8x1xf32>,
    } else {
    }
    return
  }
  func.func @transform_0(%arg0: i32, %arg1: i32) -> (i32, i32) {
    %c0_i32 = arith.constant 0 : i32
    %c0_i32_0 = arith.constant 0 : i32
    return %arg0, %c0_i32 : i32, i32
  }
  func.func @transform_1(%arg0: i32, %arg1: i32) -> (i32, i32) {
    %c0_i32 = arith.constant 0 : i32
    %c0_i32_0 = arith.constant 0 : i32
    return %arg1, %c0_i32 : i32, i32
  }
  func.func @transform_2(%arg0: i32, %arg1: i32) -> (i32, i32) {
    %c0_i32 = arith.constant 0 : i32
    %c0_i32_0 = arith.constant 0 : i32
    return %arg0, %c0_i32 : i32, i32
  }
  func.func @transform_3(%arg0: i32, %arg1: i32) -> (i32, i32) {
    %c0_i32 = arith.constant 0 : i32
    %c0_i32_0 = arith.constant 0 : i32
    return %c0_i32, %arg1 : i32, i32
  }
  func.func @transform_4(%arg0: i32, %arg1: i32) -> (i32, i32) {
    %c0_i32 = arith.constant 0 : i32
    %c0_i32_0 = arith.constant 0 : i32
    return %arg0, %c0_i32 : i32, i32
  }
  func.func @transform_5(%arg0: i32, %arg1: i32) -> (i32, i32) {
    %c0_i32 = arith.constant 0 : i32
    %c0_i32_0 = arith.constant 0 : i32
    return %c0_i32, %arg1 : i32, i32
  }
  func.func @transform_6(%arg0: i32, %arg1: i32) -> (i32, i32) {
    %c0_i32 = arith.constant 0 : i32
    %c0_i32_0 = arith.constant 0 : i32
    return %arg0, %c0_i32 : i32, i32
  }
}

</mosaic_0001>

<llo_original>
// kernel: tpu_custom_call.1
$region0: #{tpu_custom_call.1}
  #allocation0 [shape = 'u32[]', space=smem, size = 0x4, offset = 0x4, fixed_abs, tag = 'smem constant byte address 0x4 - core index']
  #allocation1 [shape = 'u32[144,128]{1,0:T(1,128)}', space=vmem, size = 0x12000, scoped, tag = 'internal scratch']
  #allocation2 [shape = 'f32[8,1]{1,0:T(8,128)}', space=vmem, size = 0x1000, scoped, tag = 'scratch operand']
  #allocation3 [shape = 'f32[8,1]{1,0:T(8,128)}', space=vmem, size = 0x1000, scoped, tag = 'scratch operand']
  %s0 = inlined_call_operand.vmem [shape: f32[8,32], index: 0, kind: input, shape index: {}]
  %s1 = inlined_call_operand.vmem [shape: f32[8,32], index: 1, kind: input, shape index: {}]
  %s2 = inlined_call_operand.vmem [shape: f32[8,1], index: 2, kind: input, shape index: {}]
  %s3 = inlined_call_operand.vmem [shape: f32[1,8], index: 3, kind: input, shape index: {}]
  %s4 = inlined_call_operand.vmem [shape: s32[8,1], index: 4, kind: input, shape index: {}]
  %s5 = inlined_call_operand.vmem [shape: s32[1,8], index: 5, kind: input, shape index: {}]
  %s6 = inlined_call_operand.vmem [shape: f32[8,1], index: 6, kind: output, shape index: {}]
  %s7 = sld [smem:[#allocation0]]
  $region42: #{tpu_custom_call.1} parent=0
    _
  %s9 = ssub.s32 1, %s7
  %s10 = scalar_select 0, %s9, %s7
  // Predicated region
  $region2: #{tpu_custom_call.1} parent=0 // pred_check
    _
  $region3: #{tpu_custom_call.1} parent=0 // pred_check_branch
    %12 = sbr.rel (0) target = $region5
  $region4: #{tpu_custom_call.1} parent=0 // pred_region
    _
  $region5: #{tpu_custom_call.1} parent=0 // pred_fallthru
    _
  // Predicated region
  $region6: #{tpu_custom_call.1} parent=0 // pred_check
    _
  $region7: #{tpu_custom_call.1} parent=0 // pred_check_branch
    %14 = sbr.rel (0) target = $region9
  $region8: #{tpu_custom_call.1} parent=0 // pred_region
    _
  $region9: #{tpu_custom_call.1} parent=0 // pred_fallthru
    _
  // Predicated region
  $region10: #{tpu_custom_call.1} parent=0 // pred_check
    _
  $region11: #{tpu_custom_call.1} parent=0 // pred_check_branch
    %16 = sbr.rel (0) target = $region13
  $region12: #{tpu_custom_call.1} parent=0 // pred_region
    _
  $region13: #{tpu_custom_call.1} parent=0 // pred_fallthru
    _
  // Predicated region
  $region14: #{tpu_custom_call.1} parent=0 // pred_check
    _
  $region15: #{tpu_custom_call.1} parent=0 // pred_check_branch
    %18 = sbr.rel (0) target = $region17
  $region16: #{tpu_custom_call.1} parent=0 // pred_region
    _
  $region17: #{tpu_custom_call.1} parent=0 // pred_fallthru
    _
  // Predicated region
  $region18: #{tpu_custom_call.1} parent=0 // pred_check
    _
  $region19: #{tpu_custom_call.1} parent=0 // pred_check_branch
    %20 = sbr.rel (0) target = $region21
  $region20: #{tpu_custom_call.1} parent=0 // pred_region
    _
  $region21: #{tpu_custom_call.1} parent=0 // pred_fallthru
    _
  // Predicated region
  $region22: #{tpu_custom_call.1} parent=0 // pred_check
    _
  $region23: #{tpu_custom_call.1} parent=0 // pred_check_branch
    %22 = sbr.rel (0) target = $region25
  $region24: #{tpu_custom_call.1} parent=0 // pred_region
    _
  $region25: #{tpu_custom_call.1} parent=0 // pred_fallthru
    _
  %p23 = scmp.eq.s32.totalorder 0, 0
  // Predicated region
  $region26: #{tpu_custom_call.1} parent=0 // pred_check
    %p24 = pneg %p23
  $region27: #{tpu_custom_call.1} parent=0 // pred_check_branch
    %26 = sbr.rel (%p24) target = $region29
  $region28: #{tpu_custom_call.1} parent=0 // pred_region
    %vm27 = vcmask 7168
    %28 = vst.msk [vmem:[#allocation2] sm:$0xff] %vm27, -1e+30
    %29 = vst.msk [vmem:[#allocation3] sm:$0xff] %vm27, 1e+30
  $region29: #{tpu_custom_call.1} parent=0 // pred_fallthru
    _
  %v30 = vld [vmem:[%s0] sm:$0xff]
  %v31 = vld [vmem:[%s1] sm:$0xff]
  %vm32 = vcmask 261120
  %v34 = vsel %vm32, %v30, 0
  %v37 = vsel %vm32, %v31, 0
  %39 = vmatprep.subr.mxu0 0.0
  %40 = vmatpush1.xpose.msra.mxu0 %v37
  %41 = vmatprep.subr.mxu0 0.0
  %42 = vmatpush1.xpose.msra.mxu0 0.0
  %43 = vmatprep.subr.mxu0 0.0
  %44 = vmatpush1.xpose.msra.mxu0 0.0
  %45 = vmatprep.subr.mxu0 0.0
  %46 = vmatpush1.xpose.msra.mxu0 0.0
  %47 = vmatprep.subr.mxu0 0.0
  %48 = vmatpush1.xpose.msra.mxu0 0.0
  %49 = vmatprep.subr.mxu0 0.0
  %50 = vmatpush1.xpose.msra.mxu0 0.0
  %51 = vmatprep.subr.mxu0 0.0
  %52 = vmatpush1.xpose.msra.mxu0 0.0
  %53 = vmatprep.subr.mxu0 0.0
  %54 = vmatpush1.xpose.msra.mxu0 0.0
  %55 = vmatprep.subr.mxu0 0.0
  %56 = vmatpush1.xpose.msra.mxu0 0.0
  %57 = vmatprep.subr.mxu0 0.0
  %58 = vmatpush1.xpose.msra.mxu0 0.0
  %59 = vmatprep.subr.mxu0 0.0
  %60 = vmatpush1.xpose.msra.mxu0 0.0
  %61 = vmatprep.subr.mxu0 0.0
  %62 = vmatpush1.xpose.msra.mxu0 0.0
  %63 = vmatprep.subr.mxu0 0.0
  %64 = vmatpush1.xpose.msra.mxu0 0.0
  %65 = vmatprep.subr.mxu0 0.0
  %66 = vmatpush1.xpose.msra.mxu0 0.0
  %67 = vmatprep.subr.mxu0 0.0
  %68 = vmatpush1.xpose.msra.mxu0 0.0
  %69 = vmatprep.subr.mxu0 0.0
  %70 = vmatpush1.xpose.msra.mxu0 0.0
  %71 = vmatprep.subr.mxu0 0.0
  %72 = vmatpush1.xpose.msra.mxu0 0.0
  %73 = vmatprep.subr.mxu0 0.0
  %74 = vmatpush1.xpose.msra.mxu0 0.0
  %75 = vmatprep.subr.mxu0 0.0
  %76 = vmatpush1.xpose.msra.mxu0 0.0
  %77 = vmatprep.subr.mxu0 0.0
  %78 = vmatpush1.xpose.msra.mxu0 0.0
  %79 = vmatprep.subr.mxu0 0.0
  %80 = vmatpush1.xpose.msra.mxu0 0.0
  %81 = vmatprep.subr.mxu0 0.0
  %82 = vmatpush1.xpose.msra.mxu0 0.0
  %83 = vmatprep.subr.mxu0 0.0
  %84 = vmatpush1.xpose.msra.mxu0 0.0
  %85 = vmatprep.subr.mxu0 0.0
  %86 = vmatpush1.xpose.msra.mxu0 0.0
  %87 = vmatprep.subr.mxu0 0.0
  %88 = vmatpush1.xpose.msra.mxu0 0.0
  %89 = vmatprep.subr.mxu0 0.0
  %90 = vmatpush1.xpose.msra.mxu0 0.0
  %91 = vmatprep.subr.mxu0 0.0
  %92 = vmatpush1.xpose.msra.mxu0 0.0
  %93 = vmatprep.subr.mxu0 0.0
  %94 = vmatpush1.xpose.msra.mxu0 0.0
  %95 = vmatprep.subr.mxu0 0.0
  %96 = vmatpush1.xpose.msra.mxu0 0.0
  %97 = vmatprep.subr.mxu0 0.0
  %98 = vmatpush1.xpose.msra.mxu0 0.0
  %99 = vmatprep.subr.mxu0 0.0
  %100 = vmatpush1.xpose.msra.mxu0 0.0
  %101 = vmatprep.subr.mxu0 0.0
  %102 = vmatpush1.xpose.msra.mxu0 0.0
  %103 = vmatprep.mubr.f32.mxu0 0.0
  %104 = vmatmul.mubr.f32.gmra.mrb[0].mxu0 %v34
  %v105 = vpop.f32.mrb[0].mxu0
  %v106 = vadd.f32 0.0, %v105
  %v107 = vpop.f32.mrb[0].mxu0
  %108 = vdwg.mxu0
  %v109 = vld [vmem:[%s2] sm:$0xff]
  %v110 = vld [vmem:[%s3] sm:$0x1]
  %112 = vset.pattern.permute.xlu0 0
  %113 = vperm.xlu0 %112, %v109
  %v114 = vpop.permute.xlu0 %113
  %v117 = vlaneseq
  %v118 = vshrl.u32 %v117, 7
  %v119 = vsub.s32 0, %v118
  %v120 = vrot.slane %v110, %v119
  %v122 = vadd.f32 %v114, %v120
  %v123 = vmul.f32 %v106, 2.0
  %v124 = vsub.f32 %v122, %v123
  %v125 = vld [vmem:[%s4] sm:$0xff]
  %v126 = vld [vmem:[%s5] sm:$0x1]
  %127 = vset.pattern.permute.xlu0 0
  %128 = vperm.xlu0 %127, %v125
  %v129 = vpop.permute.xlu0 %128
  %v130 = vlaneseq
  %v131 = vshrl.u32 %v130, 7
  %v132 = vsub.s32 0, %v131
  %v133 = vrot.slane %v126, %v132
  %vm134 = vcmp.eq.s32.totalorder %v129, %v133
  %v135 = vsel %vm134, %v124, -1e+30
  %v136 = vsel %vm134, 1e+30, %v124
  %v137 = vld [vmem:[#allocation2] sm:$0xff]
  %vm138 = vcmask 64512
  %v139 = vsel %vm138, %v135, -inf
  %140 = vmax.xlane.f32.xlu0 %v139
  %v141 = vpop.xlane.xlu0 %140
  %v142 = vmax.f32 %v137, %v141
  %vm143 = vcmask 7168
  %144 = vst.msk [vmem:[#allocation2] sm:$0xff] %vm143, %v142
  %v145 = vld [vmem:[#allocation3] sm:$0xff]
  %v146 = vsel %vm138, %v136, inf
  %147 = vmin.xlane.f32.xlu0 %v146
  %v148 = vpop.xlane.xlu0 %147
  %v149 = vmin.f32 %v145, %v148
  %150 = vst.msk [vmem:[#allocation3] sm:$0xff] %vm143, %v149
  // Predicated region
  $region30: #{tpu_custom_call.1} parent=0 // pred_check
    %p151 = pneg %p23
  $region31: #{tpu_custom_call.1} parent=0 // pred_check_branch
    %153 = sbr.rel (%p151) target = $region33
  $region32: #{tpu_custom_call.1} parent=0 // pred_region
    %v154 = vld [vmem:[#allocation2] sm:$0xff]
    %v155 = vmax.f32 %v154, 1e-12
    %v156 = vrsqrt.pop %v155
    %v157 = vmul.f32 %v155, %v156
    %vm158 = vcmp.eq.f32.partialorder %v155, inf
    %v159 = vsel %vm158, %v155, %v157
    %vm160 = vcmp.eq.f32.partialorder %v155, 0.0
    %v161 = vand.u32 %v155, 2147483648
    %v162 = vsel %vm160, %v161, %v159
    %v163 = vld [vmem:[#allocation3] sm:$0xff]
    %v164 = vmax.f32 %v163, 1e-12
    %v165 = vrsqrt.pop %v164
    %v166 = vmul.f32 %v164, %v165
    %vm167 = vcmp.eq.f32.partialorder %v164, inf
    %v168 = vsel %vm167, %v164, %v166
    %vm169 = vcmp.eq.f32.partialorder %v164, 0.0
    %v170 = vand.u32 %v164, 2147483648
    %v171 = vsel %vm169, %v170, %v168
    %v172 = vsub.f32 %v162, %v171
    %v173 = vadd.f32 %v172, 0.3
    %v174 = vmax.f32 %v173, 0.0
    %175 = vst.msk [vmem:[%s6] sm:$0xff] %vm143, %v174
  $region33: #{tpu_custom_call.1} parent=0 // pred_fallthru
    _
  // Predicated region
  $region34: #{tpu_custom_call.1} parent=0 // pred_check
    _
  $region35: #{tpu_custom_call.1} parent=0 // pred_check_branch
    %177 = sbr.rel (0) target = $region37
  $region36: #{tpu_custom_call.1} parent=0 // pred_region
    _
  $region37: #{tpu_custom_call.1} parent=0 // pred_fallthru
    _
  // Predicated region
  $region38: #{tpu_custom_call.1} parent=0 // pred_check
    _
  $region39: #{tpu_custom_call.1} parent=0 // pred_check_branch
    %179 = sbr.rel (0) target = $region41
  $region40: #{tpu_custom_call.1} parent=0 // pred_region
    _
  $region41: #{tpu_custom_call.1} parent=0 // pred_fallthru
    _

</llo_original>
